<compile_context>
chip_gen: v5e
topology: v5e:2x2
jax: 0.10.0
libtpu: 0.0.40
codegen_flags: <defaults>
</compile_context>

<pallas_src>
import functools

import jax
import jax.numpy as jnp
from jax.experimental import pallas as pl
from jax.experimental.pallas import tpu as pltpu


# ----------------------------------------------------------------------------
# Kernels (elementwise, one (TR, TC) tile per grid step)
# ----------------------------------------------------------------------------
def _relu_kernel(x_ref, o_ref):
    o_ref[...] = jnp.maximum(x_ref[...], 0.0)


def _tanh_kernel(x_ref, o_ref):
    o_ref[...] = jnp.tanh(x_ref[...])


def _split_fast_kernel(num_channels, half_channels, sinus_scale, tile_r,
                       x_ref, o_ref):
    """Every row tile lies entirely inside one channel half (TR | C//2), so a
    scalar branch selects tanh-only or sin-only for the whole tile: exactly
    one transcendental per element, no per-row mask work."""
    row0 = pl.program_id(0) * tile_r
    is_tanh = jax.lax.rem(row0, num_channels) < half_channels

    @pl.when(is_tanh)
    def _():
        o_ref[...] = jnp.tanh(x_ref[...])

    @pl.when(jnp.logical_not(is_tanh))
    def _():
        o_ref[...] = jnp.sin(x_ref[...] * sinus_scale)


def _split_masked_kernel(num_channels, half_channels, sinus_scale, tile_r,
                         x_ref, o_ref):
    """Fallback for shapes where no sublane-aligned tile divides C//2
    (e.g. C=4 or odd C): per-row mask, computes both transcendentals."""
    x = x_ref[...]
    row0 = pl.program_id(0) * tile_r
    rows = row0 + jax.lax.broadcasted_iota(jnp.int32, (tile_r, 1), 0)
    ch = jax.lax.rem(rows, num_channels)
    use_tanh = ch < half_channels                      # (TR, 1) bool, broadcasts
    o_ref[...] = jnp.where(use_tanh, jnp.tanh(x), jnp.sin(x * sinus_scale))


# ----------------------------------------------------------------------------
# Tiling helpers
# ----------------------------------------------------------------------------
def _round_up(x, m):
    return ((x + m - 1) // m) * m


def _block_budget_bytes():
    """Per-block byte budget by generation: 2 MiB on v5 (16 MiB default scoped
    VMEM must cover in+out double-buffering), 4 MiB on v6e/v7x (with an
    explicit vmem_limit_bytes; 16 MiB total is well under v7x's 64 MiB)."""
    try:
        kind = jax.devices()[0].device_kind.lower()
    except Exception:
        kind = ""
    return (2 if "v5" in kind else 4) * 1024 * 1024


def _choose_tiles(rows, cols, itemsize=4):
    """Lane-dense column tile (<=2048, mult of 128) + row tile (mult of 8)
    sized to the per-block budget; both clamped to the (padded) array."""
    tc = min(2048, _round_up(cols, 128))
    budget_elems = _block_budget_bytes() // itemsize
    tr = max(8, (budget_elems // tc) // 8 * 8)
    tr = min(tr, _round_up(rows, 8))
    return tr, tc


def _flat2d(total, fallback_rows, fallback_cols):
    """Widest multiple-of-128 column count dividing the flat element count
    (leaving >= 8 rows if possible); else the plain (N*C, H*W) view, whose
    edges are handled by cdiv-padded tiles."""
    for w in (4096, 2048, 1024, 512, 256, 128):
        if total % w == 0 and total // w >= 8:
            return total // w, w
    for w in (4096, 2048, 1024, 512, 256, 128):
        if total % w == 0:
            return total // w, w
    return fallback_rows, fallback_cols


def _split_row_tile(num_channels, max_tr):
    """Largest multiple of 8 (<= max_tr) dividing C//2, so every TR-row tile
    of the (N*C, H*W) view lies in a single channel half. None if impossible."""
    if num_channels % 2 != 0:
        return None
    half = num_channels // 2
    best = None
    for t in range(8, min(half, max_tr) + 1, 8):
        if half % t == 0:
            best = t
    return best


# ----------------------------------------------------------------------------
# Wrapper
# ----------------------------------------------------------------------------
def actvn(x, *, use_relu=False, use_sinus_tanh=False, sinus_scale=1.0):
    """Pallas TPU implementation of the PyTorch `actvn` forward pass.

    x: (N, C, H, W) float32.  Modes are compile-time flags, matching the
    module's __init__ arguments.
    """
    orig_shape = x.shape
    N, C, H, W = x.shape

    if use_relu or not use_sinus_tanh:
        # Channel identity irrelevant -> most lane-dense flat 2D view.
        rows, cols = _flat2d(x.size, N * C, H * W)
        x2 = x.reshape(rows, cols)
        tr, tc = _choose_tiles(rows, cols)
        kernel = _relu_kernel if use_relu else _tanh_kernel
    else:
        # Rows are ordered n*C + c -> channel of a row is (row % C).
        rows, cols = N * C, H * W
        x2 = x.reshape(rows, cols)
        budget_tr, tc = _choose_tiles(rows, cols)
        tr = _split_row_tile(C, budget_tr)
        if tr is not None:
            kernel = functools.partial(_split_fast_kernel, C, C // 2,
                                       float(sinus_scale), tr)
        else:
            tr = budget_tr
            kernel = functools.partial(_split_masked_kernel, C, C // 2,
                                       float(sinus_scale), tr)

    grid = (pl.cdiv(rows, tr), pl.cdiv(cols, tc))

    # NOTE: input_output_aliases={0: 0} could be added when the caller donates
    # x; omitted here because the demo reuses x for reference checks.
    out = pl.pallas_call(
        kernel,
        out_shape=jax.ShapeDtypeStruct((rows, cols), x.dtype),
        grid_spec=pltpu.PrefetchScalarGridSpec(
            num_scalar_prefetch=0,
            grid=grid,
            in_specs=[pl.BlockSpec((tr, tc), lambda i, j: (i, j))],
            out_specs=pl.BlockSpec((tr, tc), lambda i, j: (i, j))),
        compiler_params=pltpu.CompilerParams(
            dimension_semantics=("parallel", "parallel"),
            vmem_limit_bytes=32 * 1024 * 1024),
    )(x2)
    return out.reshape(orig_shape)


# ----------------------------------------------------------------------------
# Demo / correctness check
# ----------------------------------------------------------------------------
if __name__ == "__main__":
    key = jax.random.PRNGKey(0)
    k1, k2 = jax.random.split(key)
    x = jax.random.normal(k1, (2, 4, 16, 16), jnp.float32)    # NCHW, tiny C
    xb = jax.random.normal(k2, (2, 32, 16, 16), jnp.float32)  # exercises fast split path
    sinus_scale = 2.0

    y_tanh = actvn(x)                                          # default: tanh
    y_relu = actvn(x, use_relu=True)
    y_split = actvn(x, use_sinus_tanh=True, sinus_scale=sinus_scale)
    y_split_big = actvn(xb, use_sinus_tanh=True, sinus_scale=sinus_scale)
    y_tanh, y_relu, y_split, y_split_big = jax.block_until_ready(
        (y_tanh, y_relu, y_split, y_split_big))

    # Pure-JAX references (mirror the PyTorch forward).
    def ref_split(a, s):
        half = a.shape[1] // 2
        return jnp.concatenate(
            [jnp.tanh(a[:, :half]), jnp.sin(a[:, half:] * s)], axis=1)

    assert y_tanh.shape == x.shape
    assert bool(jnp.all(jnp.isfinite(y_tanh)))
    assert jnp.allclose(y_tanh, jnp.tanh(x), atol=1e-6)
    assert jnp.allclose(y_relu, jnp.maximum(x, 0.0), atol=1e-6)
    assert jnp.allclose(y_split, ref_split(x, sinus_scale), atol=1e-6)
    assert jnp.allclose(y_split_big, ref_split(xb, sinus_scale), atol=1e-6)
    print("KERNEL_OK")
</pallas_src>

<mosaic_0001>
module attributes {stable_mosaic.version = 11 : i64} {
  func.func @_tanh_kernel(%arg0: i32, %arg1: i32, %arg2: memref<8x256xf32, #tpu.memory_space<vmem>>, %arg3: memref<8x256xf32, #tpu.memory_space<vmem>>) attributes {dimension_semantics = [#tpu.dimension_semantics<parallel>, #tpu.dimension_semantics<parallel>], iteration_bounds = array<i64: 1, 1>, scalar_prefetch = 0 : i64, scratch_operands = 0 : i64, tpu.core_type = #tpu.core_type<tc>, window_params = [{transform_indices = @transform_0, window_bounds = array<i64: 8, 256>}, {transform_indices = @transform_1, window_bounds = array<i64: 8, 256>}]} {
    %c0 = arith.constant 0 : index
    %c0_0 = arith.constant 0 : index
    %0 = vector.load %arg2[%c0, %c0_0] : memref<8x256xf32, #tpu.memory_space<vmem>>, vector<8x256xf32>
    %1 = math.tanh %0 : vector<8x256xf32>
    %c0_1 = arith.constant 0 : index
    %c0_2 = arith.constant 0 : index
    %2 = vector.load %arg3[%c0_1, %c0_2] : memref<8x256xf32, #tpu.memory_space<vmem>>, vector<8x256xf32>
    tpu.vector_store %arg3[%c0_1, %c0_2], %1 {strides = array<i32>} : memref<8x256xf32, #tpu.memory_space<vmem>>, vector<8x256xf32>,
    return
  }
  func.func @transform_0(%arg0: i32, %arg1: i32) -> (i32, i32) {
    %c0_i32 = arith.constant 0 : i32
    return %arg0, %arg1 : i32, i32
  }
  func.func @transform_1(%arg0: i32, %arg1: i32) -> (i32, i32) {
    %c0_i32 = arith.constant 0 : i32
    return %arg0, %arg1 : i32, i32
  }
}

</mosaic_0001>

<llo_original>
// kernel: tpu_custom_call.1
$region0: #{tpu_custom_call.1}
  #allocation0 [shape = 'u32[]', space=smem, size = 0x4, offset = 0x4, fixed_abs, tag = 'smem constant byte address 0x4 - core index']
  #allocation1 [shape = 'u32[72,128]{1,0:T(1,128)}', space=vmem, size = 0x9000, scoped, tag = 'internal scratch']
  %s0 = inlined_call_operand.hbm [shape: f32[8,256], index: 0, kind: input, shape index: {}]
  %s1 = inlined_call_operand.hbm [shape: f32[8,256], index: 1, kind: output, shape index: {}]
  %s2 = sld [smem:[#allocation0]]
  $region18: #{tpu_custom_call.1} parent=0
    _
  %s4 = ssub.s32 1, %s2
  %s5 = scalar_select 0, %s4, %s2
  $region1: #{tpu_custom_call.1} parent=0
    #allocation2 [shape = 'u8[8192]{0}', space=vmem, size = 0x2000, scoped, tag = 'input window, operand 0, single buffered']
    #allocation3 [shape = 's32[1]{0}', space=sflag, size = 0x4, scoped, tag = 'scoped memory for tpu_custom_call.1']
    #allocation4 [shape = 's32[1]{0}', space=sflag, size = 0x4, scoped, tag = 'scoped memory for tpu_custom_call.1']
    #allocation5 [shape = 'u8[8192]{0}', space=vmem, size = 0x2000, scoped, tag = 'output window, operand 0, single buffered']
    %6 = vsyncpa [#allocation3], 0
    %7 = vsyncpa [#allocation4], 0
    // Predicated region
    $region2: #{tpu_custom_call.1} parent=1 // pred_check
      _
    $region3: #{tpu_custom_call.1} parent=1 // pred_check_branch
      %9 = sbr.rel (0) target = $region5
    $region4: #{tpu_custom_call.1} parent=1 // pred_region
      %11 = vsyncadd [#allocation3], 0
      %s13 = sshll.u32 %s0, 4
      %s14 = int_to_ptr.hbm [resolvable:$true] %s13
      %s15 = sshll.u32 [#allocation2], 4
      %s16 = int_to_ptr.vmem [resolvable:$true] %s15
      %18 = dma.hbm_to_vmem [thread:$0]  %s14, 256, %s16, [#allocation3]
    $region5: #{tpu_custom_call.1} parent=1 // pred_fallthru
      _
    // Predicated region
    $region6: #{tpu_custom_call.1} parent=1 // pred_check
      _
    $region7: #{tpu_custom_call.1} parent=1 // pred_check_branch
      %20 = sbr.rel (0) target = $region9
    $region8: #{tpu_custom_call.1} parent=1 // pred_region
      %22 = dma.done [#allocation3], 256
    $region9: #{tpu_custom_call.1} parent=1 // pred_fallthru
      _
    %v23 = vld [vmem:[#allocation2] sm:$0xff]
    %v24 = vld [vmem:[#allocation2 + $0x8] sm:$0xff]
    %v25 = vtanh.pop %v23
    %v26 = vtanh.pop %v24
    %27 = vst [vmem:[#allocation5] sm:$0xff] %v25
    %28 = vst [vmem:[#allocation5 + $0x8] sm:$0xff] %v26
    // Predicated region
    $region10: #{tpu_custom_call.1} parent=1 // pred_check
      _
    $region11: #{tpu_custom_call.1} parent=1 // pred_check_branch
      %30 = sbr.rel (0) target = $region13
    $region12: #{tpu_custom_call.1} parent=1 // pred_region
      %32 = vsyncadd [#allocation4], 0
      %s34 = sshll.u32 [#allocation5], 4
      %s35 = int_to_ptr.vmem [resolvable:$true] %s34
      %s36 = sshll.u32 %s1, 4
      %s37 = int_to_ptr.hbm [resolvable:$true] %s36
      %39 = dma.vmem_to_hbm [thread:$0]  %s35, 256, %s37, [#allocation4]
    $region13: #{tpu_custom_call.1} parent=1 // pred_fallthru
      _
    // Predicated region
    $region14: #{tpu_custom_call.1} parent=1 // pred_check
      _
    $region15: #{tpu_custom_call.1} parent=1 // pred_check_branch
      %41 = sbr.rel (0) target = $region17
    $region16: #{tpu_custom_call.1} parent=1 // pred_region
      %43 = dma.done [#allocation4], 256
    $region17: #{tpu_custom_call.1} parent=1 // pred_fallthru
      _
    %44 = vsyncpa [#allocation3], 1
    %45 = vsyncpa [#allocation4], 1

</llo_original>
